<compile_context>
chip_gen: v5e
topology: v5e:2x2
jax: 0.10.0
libtpu: 0.0.40
codegen_flags: <defaults>
</compile_context>

<pallas_src>
import functools

import jax
import jax.numpy as jnp
from jax.experimental import pallas as pl
from jax.experimental.pallas import tpu as pltpu

BN_EPS = 1e-5


def _round_up(n, m):
    return (n + m - 1) // m * m


def _classifier_kernel(x_ref, w_ref, side_ref, o_ref, *, d_in_pad, n_pad):
    B = x_ref.shape[0]
    inv_n = 1.0 / B
    ones_bt = jnp.ones((1, B), jnp.float32)  # MXU reduction LHS

    # Hoist the (1, N_pad) side-parameter rows once.
    g1, be1 = side_ref[0:1, :], side_ref[1:2, :]
    g2, be2 = side_ref[2:3, :], side_ref[3:4, :]
    b3 = side_ref[4:5, :]

    def bn_relu(h, gamma, beta):
        # Training-mode BatchNorm1d (batch mean, biased batch var) + ReLU.
        # Two-pass statistics (mu first, then E[(h-mu)^2]) avoid the
        # E[h^2]-mu^2 cancellation; both reductions run on the MXU so the
        # cross-sublane sums stay off the XLU.
        mu = jnp.dot(ones_bt, h, preferred_element_type=jnp.float32) * inv_n
        d = h - mu
        var = jnp.dot(ones_bt, d * d, preferred_element_type=jnp.float32) * inv_n
        a = gamma * jax.lax.rsqrt(var + BN_EPS)   # EUP rsqrt, O(N) not O(B*N)
        c = beta - mu * a
        return jnp.maximum(h * a + c, 0.0)

    # Static slices of the packed weight slab (padded rows are zero anyway).
    w1 = w_ref[0][:d_in_pad]   # (d_in_pad, n_pad) bf16
    w2 = w_ref[1][:n_pad]      # (n_pad,    n_pad) bf16
    w3 = w_ref[2][:n_pad]      # (n_pad,    n_pad) bf16

    # Layer 1: Linear (bias folded into batch-stat BN) -> BN -> ReLU.
    h1 = jnp.dot(x_ref[...], w1, preferred_element_type=jnp.float32)
    h1 = bn_relu(h1, g1, be1)
    # Layer 2: Linear -> BN -> ReLU.  Re-feed the MXU in bf16.
    h2 = jnp.dot(h1.astype(w_ref.dtype), w2, preferred_element_type=jnp.float32)
    h2 = bn_relu(h2, g2, be2)
    # Layer 3: Linear (+bias) -> ReLU, lane-dense bf16 store (padded cols = 0).
    h3 = jnp.dot(h2.astype(w_ref.dtype), w3, preferred_element_type=jnp.float32)
    o_ref[...] = jnp.maximum(h3 + b3, 0.0).astype(o_ref.dtype)


def pack_params(params):
    """One-time packing: single zero-padded bf16 weight slab (3, K_pad, N_pad)
    + single lane-dense f32 side-param array (5, N_pad).  b1/b2 dropped
    (exact under batch-stat BN)."""
    w1, w2, w3 = params["w1"], params["w2"], params["w3"]
    D_in, H1 = w1.shape
    H2, D_out = w3.shape
    n_pad = _round_up(max(H1, H2, D_out), 128)   # lane-dense activation width
    d_in_pad = _round_up(D_in, 16)               # bf16 (16,128) packed tile
    k_pad = max(d_in_pad, n_pad)

    def pad_w(w):
        k, n = w.shape
        return jnp.pad(w, ((0, k_pad - k), (0, n_pad - n)))

    w_slab = jnp.stack([pad_w(w1), pad_w(w2), pad_w(w3)]).astype(jnp.bfloat16)

    def row(v):
        v = v.reshape(1, -1).astype(jnp.float32)
        return jnp.pad(v, ((0, 0), (0, n_pad - v.shape[1])))

    side = jnp.concatenate(
        [row(params["g1"]), row(params["be1"]),
         row(params["g2"]), row(params["be2"]), row(params["b3"])], axis=0)

    return {"w": w_slab, "side": side,
            "d_in": D_in, "d_in_pad": d_in_pad, "d_out": D_out}


def _vmem_limit_bytes(B, d_in_pad, k_pad, n_pad):
    fixed = 3 * k_pad * n_pad * 2 + 5 * n_pad * 4          # weights + side
    per_row = d_in_pad * 2 + n_pad * 2 + 6 * n_pad * 4     # x, out, f32 temps
    need = fixed + B * per_row
    # 48 MiB cap is safe inside v7x's 64 MiB physical VMEM; on v5e/v6e
    # (128 MiB physical) this could be raised toward ~96 MiB to push the
    # single-shot resident-batch ceiling before the gridded two-pass path.
    return int(min(max(8 << 20, 2 * need), 48 << 20))


def classifier_forward(x, packed):
    """x: (B, D_in) float32.  Returns the lane-dense padded bf16 output slab
    (B, N_pad); real logits are [:, :D_out] and padded columns are exactly 0
    (consumers slice or mask lazily — no forced post-kernel slice here)."""
    B, D_in = x.shape
    w_slab, side = packed["w"], packed["side"]
    d_in_pad = packed["d_in_pad"]
    _, k_pad, n_pad = w_slab.shape

    # bf16 + tiny zero-pad in the wrapper: halves x HBM bytes vs f32 and keeps
    # the first matmul aligned to the bf16 packed tile.
    x_bf = jnp.pad(x.astype(jnp.bfloat16), ((0, 0), (0, d_in_pad - D_in)))

    kernel = functools.partial(_classifier_kernel,
                               d_in_pad=d_in_pad, n_pad=n_pad)

    flops = (2 * B * n_pad * (d_in_pad + 2 * n_pad)   # 3 layer matmuls
             + 8 * B * n_pad                          # 4 BN-stat matmuls
             + 14 * B * n_pad)                        # BN/ReLU elementwise
    bytes_accessed = (x_bf.size * 2 + w_slab.size * 2 + side.size * 4
                      + B * n_pad * 2)

    vmem = pl.BlockSpec(memory_space=pltpu.MemorySpace.VMEM)
    return pl.pallas_call(
        kernel,
        out_shape=jax.ShapeDtypeStruct((B, n_pad), jnp.bfloat16),
        in_specs=[vmem, vmem, vmem],
        out_specs=vmem,
        compiler_params=pltpu.CompilerParams(
            vmem_limit_bytes=_vmem_limit_bytes(B, d_in_pad, k_pad, n_pad)),
        cost_estimate=pl.CostEstimate(
            flops=int(flops), transcendentals=int(2 * n_pad),
            bytes_accessed=int(bytes_accessed)),
    )(x_bf, w_slab, side)


def init_params(key, D_in, H1, H2, D_out):
    """PyTorch-like Linear init (uniform +/- 1/sqrt(fan_in)); weights stored
    pre-transposed as (in_features, out_features); BN gamma=1, beta=0."""
    ks = jax.random.split(key, 6)

    def linear(kw, kb, fan_in, fan_out):
        bound = 1.0 / jnp.sqrt(jnp.float32(fan_in))
        w = jax.random.uniform(kw, (fan_in, fan_out), jnp.float32, -bound, bound)
        b = jax.random.uniform(kb, (fan_out,), jnp.float32, -bound, bound)
        return w, b

    w1, b1 = linear(ks[0], ks[1], D_in, H1)
    w2, b2 = linear(ks[2], ks[3], H1, H2)
    w3, b3 = linear(ks[4], ks[5], H2, D_out)
    return {
        "w1": w1, "b1": b1,
        "g1": jnp.ones((H1,), jnp.float32), "be1": jnp.zeros((H1,), jnp.float32),
        "w2": w2, "b2": b2,
        "g2": jnp.ones((H2,), jnp.float32), "be2": jnp.zeros((H2,), jnp.float32),
        "w3": w3, "b3": b3,
    }


if __name__ == "__main__":
    B, D_in, H1, H2, D_out = 8, 32, 64, 32, 16

    key = jax.random.PRNGKey(0)
    kx, kp = jax.random.split(key)
    x = jax.random.normal(kx, (B, D_in), jnp.float32)
    params = init_params(kp, D_in, H1, H2, D_out)

    packed = pack_params(params)
    out_pad = classifier_forward(x, packed)
    jax.block_until_ready(out_pad)

    # Pure-JAX f32 reference of the PyTorch module semantics (includes b1/b2;
    # they cancel inside training-mode BN, which the kernel exploits).
    def ref(x, p):
        def bn(h, g, b):
            mu = h.mean(0, keepdims=True)
            var = ((h - mu) ** 2).mean(0, keepdims=True)
            return (h - mu) / jnp.sqrt(var + BN_EPS) * g + b
        h = jnp.maximum(bn(x @ p["w1"] + p["b1"], p["g1"], p["be1"]), 0.0)
        h = jnp.maximum(bn(h @ p["w2"] + p["b2"], p["g2"], p["be2"]), 0.0)
        return jnp.maximum(h @ p["w3"] + p["b3"], 0.0)

    out = out_pad[:, :D_out].astype(jnp.float32)
    r = ref(x, params)
    assert out.shape == (B, D_out)
    # Padded columns must be exactly zero.
    assert jnp.all(out_pad[:, D_out:] == 0)
    # bf16 MXU inputs/output with f32 accumulation -> bf16-level tolerance.
    assert jnp.allclose(out, r, atol=5e-2, rtol=5e-2), float(jnp.max(jnp.abs(out - r)))
    print("KERNEL_OK")
</pallas_src>

<mosaic_0001>
module attributes {stable_mosaic.version = 11 : i64} {
  func.func @_classifier_kernel(%arg0: memref<8x32xbf16, #tpu.memory_space<vmem>>, %arg1: memref<3x128x128xbf16, #tpu.memory_space<vmem>>, %arg2: memref<5x128xf32, #tpu.memory_space<vmem>>, %arg3: memref<8x128xbf16, #tpu.memory_space<vmem>>) attributes {dimension_semantics = [], scalar_prefetch = 0 : i64, scratch_operands = 0 : i64, tpu.core_type = #tpu.core_type<tc>} {
    %cst = arith.constant 1.000000e+00 : f32
    %0 = vector.broadcast %cst : f32 to vector<1x8xf32>
    %c0 = arith.constant 0 : index
    %c0_0 = arith.constant 0 : index
    %1 = vector.load %arg2[%c0, %c0_0] : memref<5x128xf32, #tpu.memory_space<vmem>>, vector<1x128xf32>
    %c1 = arith.constant 1 : index
    %c0_1 = arith.constant 0 : index
    %2 = vector.load %arg2[%c1, %c0_1] : memref<5x128xf32, #tpu.memory_space<vmem>>, vector<1x128xf32>
    %c2 = arith.constant 2 : index
    %c0_2 = arith.constant 0 : index
    %3 = vector.load %arg2[%c2, %c0_2] : memref<5x128xf32, #tpu.memory_space<vmem>>, vector<1x128xf32>
    %c3 = arith.constant 3 : index
    %c0_3 = arith.constant 0 : index
    %4 = vector.load %arg2[%c3, %c0_3] : memref<5x128xf32, #tpu.memory_space<vmem>>, vector<1x128xf32>
    %c4 = arith.constant 4 : index
    %c0_4 = arith.constant 0 : index
    %5 = vector.load %arg2[%c4, %c0_4] : memref<5x128xf32, #tpu.memory_space<vmem>>, vector<1x128xf32>
    %c0_5 = arith.constant 0 : index
    %c0_6 = arith.constant 0 : index
    %c0_7 = arith.constant 0 : index
    %6 = vector.load %arg1[%c0_5, %c0_6, %c0_7] : memref<3x128x128xbf16, #tpu.memory_space<vmem>>, vector<1x128x128xbf16>
    %7 = vector.shape_cast %6 : vector<1x128x128xbf16> to vector<128x128xbf16>
    %8 = vector.extract_strided_slice %7 {offsets = [0, 0], sizes = [32, 128], strides = [1, 1]} : vector<128x128xbf16> to vector<32x128xbf16>
    %c1_8 = arith.constant 1 : index
    %c0_9 = arith.constant 0 : index
    %c0_10 = arith.constant 0 : index
    %9 = vector.load %arg1[%c1_8, %c0_9, %c0_10] : memref<3x128x128xbf16, #tpu.memory_space<vmem>>, vector<1x128x128xbf16>
    %10 = vector.shape_cast %9 : vector<1x128x128xbf16> to vector<128x128xbf16>
    %c2_11 = arith.constant 2 : index
    %c0_12 = arith.constant 0 : index
    %c0_13 = arith.constant 0 : index
    %11 = vector.load %arg1[%c2_11, %c0_12, %c0_13] : memref<3x128x128xbf16, #tpu.memory_space<vmem>>, vector<1x128x128xbf16>
    %12 = vector.shape_cast %11 : vector<1x128x128xbf16> to vector<128x128xbf16>
    %c0_14 = arith.constant 0 : index
    %c0_15 = arith.constant 0 : index
    %13 = vector.load %arg0[%c0_14, %c0_15] : memref<8x32xbf16, #tpu.memory_space<vmem>>, vector<8x32xbf16>
    %cst_16 = arith.constant dense<0.000000e+00> : vector<8x128xf32>
    %14 = tpu.matmul %13, %8, %cst_16 {dimension_numbers = #tpu.dot_dimension_numbers<[1], [0], [0], [1], [0, 0, 1, 1], [], []>} : vector<8x32xbf16>, vector<32x128xbf16>, vector<8x128xf32> -> vector<8x128xf32>
    %cst_17 = arith.constant dense<0.000000e+00> : vector<1x128xf32>
    %15 = tpu.matmul %0, %14, %cst_17 {dimension_numbers = #tpu.dot_dimension_numbers<[1], [0], [0], [1], [0, 0, 1, 1], [], []>} : vector<1x8xf32>, vector<8x128xf32>, vector<1x128xf32> -> vector<1x128xf32>
    %cst_18 = arith.constant 1.250000e-01 : f32
    %16 = vector.broadcast %cst_18 : f32 to vector<1x128xf32>
    %17 = arith.mulf %15, %16 : vector<1x128xf32>
    %18 = vector.broadcast %17 : vector<1x128xf32> to vector<8x128xf32>
    %19 = arith.subf %14, %18 : vector<8x128xf32>
    %20 = arith.mulf %19, %19 : vector<8x128xf32>
    %cst_19 = arith.constant dense<0.000000e+00> : vector<1x128xf32>
    %21 = tpu.matmul %0, %20, %cst_19 {dimension_numbers = #tpu.dot_dimension_numbers<[1], [0], [0], [1], [0, 0, 1, 1], [], []>} : vector<1x8xf32>, vector<8x128xf32>, vector<1x128xf32> -> vector<1x128xf32>
    %cst_20 = arith.constant 1.250000e-01 : f32
    %22 = vector.broadcast %cst_20 : f32 to vector<1x128xf32>
    %23 = arith.mulf %21, %22 : vector<1x128xf32>
    %cst_21 = arith.constant 9.99999974E-6 : f32
    %24 = vector.broadcast %cst_21 : f32 to vector<1x128xf32>
    %25 = arith.addf %23, %24 : vector<1x128xf32>
    %26 = math.rsqrt %25 : vector<1x128xf32>
    %27 = arith.mulf %1, %26 : vector<1x128xf32>
    %28 = arith.mulf %17, %27 : vector<1x128xf32>
    %29 = arith.subf %2, %28 : vector<1x128xf32>
    %30 = vector.broadcast %27 : vector<1x128xf32> to vector<8x128xf32>
    %31 = arith.mulf %14, %30 : vector<8x128xf32>
    %32 = vector.broadcast %29 : vector<1x128xf32> to vector<8x128xf32>
    %33 = arith.addf %31, %32 : vector<8x128xf32>
    %cst_22 = arith.constant 0.000000e+00 : f32
    %34 = vector.broadcast %cst_22 : f32 to vector<8x128xf32>
    %35 = arith.maximumf %33, %34 : vector<8x128xf32>
    %36 = arith.truncf %35 : vector<8x128xf32> to vector<8x128xbf16>
    %cst_23 = arith.constant dense<0.000000e+00> : vector<8x128xf32>
    %37 = tpu.matmul %36, %10, %cst_23 {dimension_numbers = #tpu.dot_dimension_numbers<[1], [0], [0], [1], [0, 0, 1, 1], [], []>} : vector<8x128xbf16>, vector<128x128xbf16>, vector<8x128xf32> -> vector<8x128xf32>
    %cst_24 = arith.constant dense<0.000000e+00> : vector<1x128xf32>
    %38 = tpu.matmul %0, %37, %cst_24 {dimension_numbers = #tpu.dot_dimension_numbers<[1], [0], [0], [1], [0, 0, 1, 1], [], []>} : vector<1x8xf32>, vector<8x128xf32>, vector<1x128xf32> -> vector<1x128xf32>
    %cst_25 = arith.constant 1.250000e-01 : f32
    %39 = vector.broadcast %cst_25 : f32 to vector<1x128xf32>
    %40 = arith.mulf %38, %39 : vector<1x128xf32>
    %41 = vector.broadcast %40 : vector<1x128xf32> to vector<8x128xf32>
    %42 = arith.subf %37, %41 : vector<8x128xf32>
    %43 = arith.mulf %42, %42 : vector<8x128xf32>
    %cst_26 = arith.constant dense<0.000000e+00> : vector<1x128xf32>
    %44 = tpu.matmul %0, %43, %cst_26 {dimension_numbers = #tpu.dot_dimension_numbers<[1], [0], [0], [1], [0, 0, 1, 1], [], []>} : vector<1x8xf32>, vector<8x128xf32>, vector<1x128xf32> -> vector<1x128xf32>
    %cst_27 = arith.constant 1.250000e-01 : f32
    %45 = vector.broadcast %cst_27 : f32 to vector<1x128xf32>
    %46 = arith.mulf %44, %45 : vector<1x128xf32>
    %cst_28 = arith.constant 9.99999974E-6 : f32
    %47 = vector.broadcast %cst_28 : f32 to vector<1x128xf32>
    %48 = arith.addf %46, %47 : vector<1x128xf32>
    %49 = math.rsqrt %48 : vector<1x128xf32>
    %50 = arith.mulf %3, %49 : vector<1x128xf32>
    %51 = arith.mulf %40, %50 : vector<1x128xf32>
    %52 = arith.subf %4, %51 : vector<1x128xf32>
    %53 = vector.broadcast %50 : vector<1x128xf32> to vector<8x128xf32>
    %54 = arith.mulf %37, %53 : vector<8x128xf32>
    %55 = vector.broadcast %52 : vector<1x128xf32> to vector<8x128xf32>
    %56 = arith.addf %54, %55 : vector<8x128xf32>
    %cst_29 = arith.constant 0.000000e+00 : f32
    %57 = vector.broadcast %cst_29 : f32 to vector<8x128xf32>
    %58 = arith.maximumf %56, %57 : vector<8x128xf32>
    %59 = arith.truncf %58 : vector<8x128xf32> to vector<8x128xbf16>
    %cst_30 = arith.constant dense<0.000000e+00> : vector<8x128xf32>
    %60 = tpu.matmul %59, %12, %cst_30 {dimension_numbers = #tpu.dot_dimension_numbers<[1], [0], [0], [1], [0, 0, 1, 1], [], []>} : vector<8x128xbf16>, vector<128x128xbf16>, vector<8x128xf32> -> vector<8x128xf32>
    %61 = vector.broadcast %5 : vector<1x128xf32> to vector<8x128xf32>
    %62 = arith.addf %60, %61 : vector<8x128xf32>
    %cst_31 = arith.constant 0.000000e+00 : f32
    %63 = vector.broadcast %cst_31 : f32 to vector<8x128xf32>
    %64 = arith.maximumf %62, %63 : vector<8x128xf32>
    %65 = arith.truncf %64 : vector<8x128xf32> to vector<8x128xbf16>
    %c0_32 = arith.constant 0 : index
    %c0_33 = arith.constant 0 : index
    %66 = vector.load %arg3[%c0_32, %c0_33] : memref<8x128xbf16, #tpu.memory_space<vmem>>, vector<8x128xbf16>
    tpu.vector_store %arg3[%c0_32, %c0_33], %65 {strides = array<i32>} : memref<8x128xbf16, #tpu.memory_space<vmem>>, vector<8x128xbf16>,
    return
  }
}

</mosaic_0001>

<llo_original>
// kernel: tpu_custom_call.1
$region0: #{tpu_custom_call.1}
  #allocation0 [shape = 'u32[]', space=smem, size = 0x4, offset = 0x4, fixed_abs, tag = 'smem constant byte address 0x4 - core index']
  #allocation1 [shape = 'u32[72,128]{1,0:T(1,128)}', space=vmem, size = 0x9000, scoped, tag = 'internal scratch']
  %s0 = inlined_call_operand.hbm [shape: bf16[8,32], index: 0, kind: input, shape index: {}]
  %s1 = inlined_call_operand.hbm [shape: bf16[3,128,128], index: 1, kind: input, shape index: {}]
  %s2 = inlined_call_operand.hbm [shape: f32[5,128], index: 2, kind: input, shape index: {}]
  %s3 = inlined_call_operand.hbm [shape: bf16[8,128], index: 3, kind: output, shape index: {}]
  %s4 = sld [smem:[#allocation0]]
  $region34: #{tpu_custom_call.1} parent=0
    _
  %s6 = ssub.s32 1, %s4
  %s7 = scalar_select 0, %s6, %s4
  $region1: #{tpu_custom_call.1} parent=0
    #allocation2 [shape = 'u8[2048]{0}', space=vmem, size = 0x800, scoped, tag = 'input window, operand 0, single buffered']
    #allocation3 [shape = 's32[1]{0}', space=sflag, size = 0x4, scoped, tag = 'scoped memory for tpu_custom_call.1']
    #allocation4 [shape = 's32[1]{0}', space=sflag, size = 0x4, scoped, tag = 'scoped memory for tpu_custom_call.1']
    #allocation5 [shape = 'u8[98304]{0}', space=vmem, size = 0x18000, scoped, tag = 'input window, operand 1, single buffered']
    #allocation6 [shape = 's32[1]{0}', space=sflag, size = 0x4, scoped, tag = 'scoped memory for tpu_custom_call.1']
    #allocation7 [shape = 'u8[4096]{0}', space=vmem, size = 0x1000, scoped, tag = 'input window, operand 2, single buffered']
    #allocation8 [shape = 'u8[2048]{0}', space=vmem, size = 0x800, scoped, tag = 'output window, operand 0, single buffered']
    %8 = vsyncpa [#allocation3], 0
    %9 = vsyncpa [#allocation6], 0
    %10 = vsyncpa [#allocation4], 0
    // Predicated region
    $region2: #{tpu_custom_call.1} parent=1 // pred_check
      _
    $region3: #{tpu_custom_call.1} parent=1 // pred_check_branch
      %12 = sbr.rel (0) target = $region5
    $region4: #{tpu_custom_call.1} parent=1 // pred_region
      %14 = vsyncadd [#allocation3], 0
      %s16 = sshll.u32 %s0, 4
      %s17 = int_to_ptr.hbm [resolvable:$true] %s16
      %s18 = sshll.u32 [#allocation2], 4
      %s19 = int_to_ptr.vmem [resolvable:$true] %s18
      %21 = dma.hbm_to_vmem [thread:$0]  %s17, 64, %s19, [#allocation3]
    $region5: #{tpu_custom_call.1} parent=1 // pred_fallthru
      _
    // Predicated region
    $region6: #{tpu_custom_call.1} parent=1 // pred_check
      _
    $region7: #{tpu_custom_call.1} parent=1 // pred_check_branch
      %23 = sbr.rel (0) target = $region9
    $region8: #{tpu_custom_call.1} parent=1 // pred_region
      %25 = vsyncadd [#allocation6], 0
      %s26 = sshll.u32 %s1, 4
      %s27 = int_to_ptr.hbm [resolvable:$true] %s26
      %s28 = sshll.u32 [#allocation5], 4
      %s29 = int_to_ptr.vmem [resolvable:$true] %s28
      %34 = dma.hbm_to_vmem [thread:$0]  %s27, 3072, %s29, [#allocation6], 64, 64, 4
    $region9: #{tpu_custom_call.1} parent=1 // pred_fallthru
      _
    // Predicated region
    $region10: #{tpu_custom_call.1} parent=1 // pred_check
      _
    $region11: #{tpu_custom_call.1} parent=1 // pred_check_branch
      %36 = sbr.rel (0) target = $region13
    $region12: #{tpu_custom_call.1} parent=1 // pred_region
      %38 = vsyncadd [#allocation6], 0
      %s40 = sshll.u32 %s2, 4
      %s41 = int_to_ptr.hbm [resolvable:$true] %s40
      %s42 = sshll.u32 [#allocation7], 4
      %s43 = int_to_ptr.vmem [resolvable:$true] %s42
      %45 = dma.hbm_to_vmem [thread:$0]  %s41, 128, %s43, [#allocation6]
    $region13: #{tpu_custom_call.1} parent=1 // pred_fallthru
      _
    // Predicated region
    $region14: #{tpu_custom_call.1} parent=1 // pred_check
      _
    $region15: #{tpu_custom_call.1} parent=1 // pred_check_branch
      %47 = sbr.rel (0) target = $region17
    $region16: #{tpu_custom_call.1} parent=1 // pred_region
      %49 = dma.done [#allocation3], 64
    $region17: #{tpu_custom_call.1} parent=1 // pred_fallthru
      _
    // Predicated region
    $region18: #{tpu_custom_call.1} parent=1 // pred_check
      _
    $region19: #{tpu_custom_call.1} parent=1 // pred_check_branch
      %51 = sbr.rel (0) target = $region21
    $region20: #{tpu_custom_call.1} parent=1 // pred_region
      %53 = dma.done [#allocation6], 3072
    $region21: #{tpu_custom_call.1} parent=1 // pred_fallthru
      _
    // Predicated region
    $region22: #{tpu_custom_call.1} parent=1 // pred_check
      _
    $region23: #{tpu_custom_call.1} parent=1 // pred_check_branch
      %55 = sbr.rel (0) target = $region25
    $region24: #{tpu_custom_call.1} parent=1 // pred_region
      %57 = dma.done [#allocation6], 128
    $region25: #{tpu_custom_call.1} parent=1 // pred_fallthru
      _
    %v59 = vld [vmem:[#allocation7] sm:$0x1]
    %v60 = vld [vmem:[#allocation7 + $0x1] sm:$0x1]
    %v61 = vld [vmem:[#allocation7 + $0x2] sm:$0x1]
    %v62 = vld [vmem:[#allocation7 + $0x3] sm:$0x1]
    %v63 = vld [vmem:[#allocation7 + $0x4] sm:$0x1]
    %v64 = vld [vmem:[#allocation5] sm:$0xf]
    %v65 = vld [vmem:[#allocation5 + $0x4] sm:$0xf]
    %v66 = vld [vmem:[#allocation5 + $0x8] sm:$0xf]
    %v67 = vld [vmem:[#allocation5 + $0xc] sm:$0xf]
    %s68 = scalar_lea.vmem [#allocation5], 64
    %v69 = vld [vmem:[%s68] sm:$0xf]
    %v70 = vld [vmem:[%s68 + $0x4] sm:$0xf]
    %v71 = vld [vmem:[%s68 + $0x8] sm:$0xf]
    %v72 = vld [vmem:[%s68 + $0xc] sm:$0xf]
    %v73 = vld [vmem:[%s68 + $0x10] sm:$0xf]
    %v74 = vld [vmem:[%s68 + $0x14] sm:$0xf]
    %v75 = vld [vmem:[%s68 + $0x18] sm:$0xf]
    %v76 = vld [vmem:[%s68 + $0x1c] sm:$0xf]
    %v77 = vld [vmem:[%s68 + $0x20] sm:$0xf]
    %v78 = vld [vmem:[%s68 + $0x24] sm:$0xf]
    %v79 = vld [vmem:[%s68 + $0x28] sm:$0xf]
    %v80 = vld [vmem:[%s68 + $0x2c] sm:$0xf]
    %v81 = vld [vmem:[%s68 + $0x30] sm:$0xf]
    %v82 = vld [vmem:[%s68 + $0x34] sm:$0xf]
    %v83 = vld [vmem:[%s68 + $0x38] sm:$0xf]
    %v84 = vld [vmem:[%s68 + $0x3c] sm:$0xf]
    %s85 = scalar_lea.vmem [#allocation5], 128
    %v86 = vld [vmem:[%s85] sm:$0xf]
    %v87 = vld [vmem:[%s85 + $0x4] sm:$0xf]
    %v88 = vld [vmem:[%s85 + $0x8] sm:$0xf]
    %v89 = vld [vmem:[%s85 + $0xc] sm:$0xf]
    %v90 = vld [vmem:[%s85 + $0x10] sm:$0xf]
    %v91 = vld [vmem:[%s85 + $0x14] sm:$0xf]
    %v92 = vld [vmem:[%s85 + $0x18] sm:$0xf]
    %v93 = vld [vmem:[%s85 + $0x1c] sm:$0xf]
    %v94 = vld [vmem:[%s85 + $0x20] sm:$0xf]
    %v95 = vld [vmem:[%s85 + $0x24] sm:$0xf]
    %v96 = vld [vmem:[%s85 + $0x28] sm:$0xf]
    %v97 = vld [vmem:[%s85 + $0x2c] sm:$0xf]
    %v98 = vld [vmem:[%s85 + $0x30] sm:$0xf]
    %v99 = vld [vmem:[%s85 + $0x34] sm:$0xf]
    %v100 = vld [vmem:[%s85 + $0x38] sm:$0xf]
    %v101 = vld [vmem:[%s85 + $0x3c] sm:$0xf]
    %v102 = vld [vmem:[#allocation2] sm:$0xf]
    %v107 = vunpack.c.l.b16 %v64
    %v108 = vunpack.c.l.b16 %v65
    %v109 = vunpack.c.l.b16 %v66
    %v110 = vunpack.c.l.b16 %v67
    %v111 = vpack.c.b16 %v108, %v107
    %v112 = vpack.c.b16 %v110, %v109
    %vm115 = vcmask 261120
    %v117 = vsel %vm115, %v102, 0
    %119 = vmatpush.bf16.msra.mxu0 0
    %120 = vmatpush.bf16.msra.mxu0 0
    %121 = vmatpush.bf16.msra.mxu0 0
    %122 = vmatpush.bf16.msra.mxu0 0
    %123 = vmatpush.bf16.msra.mxu0 0
    %124 = vmatpush.bf16.msra.mxu0 0
    %125 = vmatpush.bf16.msra.mxu0 %v112
    %126 = vmatpush.bf16.msra.mxu0 %v111
    %127 = vmatmul.bf16.gmra.mxu0 %v117
    %v128 = vpop.f32.mrf.mxu0
    %v129 = vadd.f32 0.0, %v128
    %v130 = vpop.f32.mrf.mxu0
    %131 = vdwg.mxu0
    %vm132 = vcmask 64512
    %v134 = vsel %vm132, 1.0, 0
    %136 = vmatpush.msra.mxu0 0.0
    %137 = vmatpush.msra.mxu0 0.0
    %138 = vmatpush.msra.mxu0 0.0
    %139 = vmatpush.msra.mxu0 0.0
    %140 = vmatpush.msra.mxu0 0.0
    %141 = vmatpush.msra.mxu0 0.0
    %142 = vmatpush.msra.mxu0 0.0
    %143 = vmatpush.msra.mxu0 0.0
    %144 = vmatpush.msra.mxu0 0.0
    %145 = vmatpush.msra.mxu0 0.0
    %146 = vmatpush.msra.mxu0 0.0
    %147 = vmatpush.msra.mxu0 0.0
    %148 = vmatpush.msra.mxu0 0.0
    %149 = vmatpush.msra.mxu0 0.0
    %150 = vmatpush.msra.mxu0 0.0
    %151 = vmatpush.msra.mxu0 %v129
    %152 = vmatmul.f32.gmra.mxu0 %v134
    %v153 = vpop.f32.mrf.mxu0
    %v154 = vadd.f32 0.0, %v153
    %155 = vdwg.mxu0
    %v156 = vmul.f32 %v154, 0.125
    %v157 = vperm.slane %v156, 0
    %v158 = vsub.f32 %v129, %v157
    %v159 = vmul.f32 %v158, %v158
    %160 = vmatpush.msra.mxu0 0.0
    %161 = vmatpush.msra.mxu0 0.0
    %162 = vmatpush.msra.mxu0 0.0
    %163 = vmatpush.msra.mxu0 0.0
    %164 = vmatpush.msra.mxu0 0.0
    %165 = vmatpush.msra.mxu0 0.0
    %166 = vmatpush.msra.mxu0 0.0
    %167 = vmatpush.msra.mxu0 0.0
    %168 = vmatpush.msra.mxu0 0.0
    %169 = vmatpush.msra.mxu0 0.0
    %170 = vmatpush.msra.mxu0 0.0
    %171 = vmatpush.msra.mxu0 0.0
    %172 = vmatpush.msra.mxu0 0.0
    %173 = vmatpush.msra.mxu0 0.0
    %174 = vmatpush.msra.mxu0 0.0
    %175 = vmatpush.msra.mxu0 %v159
    %176 = vmatmul.f32.gmra.mxu0 %v134
    %v177 = vpop.f32.mrf.mxu0
    %v178 = vadd.f32 0.0, %v177
    %179 = vdwg.mxu0
    %v180 = vmul.f32 %v178, 0.125
    %v181 = vadd.f32 %v180, 1e-05
    %v182 = vrsqrt.pop %v181
    %v183 = vmul.f32 %v182, %v181
    %v184 = vmul.f32 %v183, %v182
    %v185 = vmul.f32 0.5, %v184
    %v186 = vsub.f32 1.5, %v185
    %v187 = vmul.f32 %v182, %v186
    %vm188 = vweird.f32 %v181
    %vm189 = vweird.f32 %v182
    %vm190 = vmor %vm188, %vm189
    %v191 = vsel %vm190, %v182, %v187
    %v192 = vmul.f32 %v59, %v191
    %v193 = vmul.f32 %v156, %v192
    %v194 = vsub.f32 %v60, %v193
    %v195 = vperm.slane %v192, 0
    %v196 = vmul.f32 %v129, %v195
    %v197 = vperm.slane %v194, 0
    %v198 = vadd.f32 %v196, %v197
    %v199 = vmax.f32 %v198, 0.0
    %v200 = vpack.c.bf16 %v199, %v199
    %v217 = vunpack.c.l.b16 %v69
    %v218 = vunpack.c.l.b16 %v70
    %v219 = vunpack.c.l.b16 %v71
    %v220 = vunpack.c.l.b16 %v72
    %v221 = vunpack.c.l.b16 %v73
    %v222 = vunpack.c.l.b16 %v74
    %v223 = vunpack.c.l.b16 %v75
    %v224 = vunpack.c.l.b16 %v76
    %v225 = vunpack.c.l.b16 %v77
    %v226 = vunpack.c.l.b16 %v78
    %v227 = vunpack.c.l.b16 %v79
    %v228 = vunpack.c.l.b16 %v80
    %v229 = vunpack.c.l.b16 %v81
    %v230 = vunpack.c.l.b16 %v82
    %v231 = vunpack.c.l.b16 %v83
    %v232 = vunpack.c.l.b16 %v84
    %v233 = vpack.c.b16 %v218, %v217
    %v234 = vpack.c.b16 %v220, %v219
    %v235 = vpack.c.b16 %v222, %v221
    %v236 = vpack.c.b16 %v224, %v223
    %v237 = vpack.c.b16 %v226, %v225
    %v238 = vpack.c.b16 %v228, %v227
    %v239 = vpack.c.b16 %v230, %v229
    %v240 = vpack.c.b16 %v232, %v231
    %249 = vmatpush.bf16.msra.mxu0 %v240
    %250 = vmatpush.bf16.msra.mxu0 %v239
    %251 = vmatpush.bf16.msra.mxu0 %v238
    %252 = vmatpush.bf16.msra.mxu0 %v237
    %253 = vmatpush.bf16.msra.mxu0 %v236
    %254 = vmatpush.bf16.msra.mxu0 %v235
    %255 = vmatpush.bf16.msra.mxu0 %v234
    %256 = vmatpush.bf16.msra.mxu0 %v233
    %257 = vmatmul.bf16.gmra.mxu0 %v200
    %v258 = vpop.f32.mrf.mxu0
    %v259 = vadd.f32 0.0, %v258
    %v260 = vpop.f32.mrf.mxu0
    %261 = vdwg.mxu0
    %262 = vmatpush.msra.mxu0 0.0
    %263 = vmatpush.msra.mxu0 0.0
    %264 = vmatpush.msra.mxu0 0.0
    %265 = vmatpush.msra.mxu0 0.0
    %266 = vmatpush.msra.mxu0 0.0
    %267 = vmatpush.msra.mxu0 0.0
    %268 = vmatpush.msra.mxu0 0.0
    %269 = vmatpush.msra.mxu0 0.0
    %270 = vmatpush.msra.mxu0 0.0
    %271 = vmatpush.msra.mxu0 0.0
    %272 = vmatpush.msra.mxu0 0.0
    %273 = vmatpush.msra.mxu0 0.0
    %274 = vmatpush.msra.mxu0 0.0
    %275 = vmatpush.msra.mxu0 0.0
    %276 = vmatpush.msra.mxu0 0.0
    %277 = vmatpush.msra.mxu0 %v259
    %278 = vmatmul.f32.gmra.mxu0 %v134
    %v279 = vpop.f32.mrf.mxu0
    %v280 = vadd.f32 0.0, %v279
    %281 = vdwg.mxu0
    %v282 = vmul.f32 %v280, 0.125
    %v283 = vperm.slane %v282, 0
    %v284 = vsub.f32 %v259, %v283
    %v285 = vmul.f32 %v284, %v284
    %286 = vmatpush.msra.mxu0 0.0
    %287 = vmatpush.msra.mxu0 0.0
    %288 = vmatpush.msra.mxu0 0.0
    %289 = vmatpush.msra.mxu0 0.0
    %290 = vmatpush.msra.mxu0 0.0
    %291 = vmatpush.msra.mxu0 0.0
    %292 = vmatpush.msra.mxu0 0.0
    %293 = vmatpush.msra.mxu0 0.0
    %294 = vmatpush.msra.mxu0 0.0
    %295 = vmatpush.msra.mxu0 0.0
    %296 = vmatpush.msra.mxu0 0.0
    %297 = vmatpush.msra.mxu0 0.0
    %298 = vmatpush.msra.mxu0 0.0
    %299 = vmatpush.msra.mxu0 0.0
    %300 = vmatpush.msra.mxu0 0.0
    %301 = vmatpush.msra.mxu0 %v285
    %302 = vmatmul.f32.gmra.mxu0 %v134
    %v303 = vpop.f32.mrf.mxu0
    %v304 = vadd.f32 0.0, %v303
    %305 = vdwg.mxu0
    %v306 = vmul.f32 %v304, 0.125
    %v307 = vadd.f32 %v306, 1e-05
    %v308 = vrsqrt.pop %v307
    %v309 = vmul.f32 %v308, %v307
    %v310 = vmul.f32 %v309, %v308
    %v311 = vmul.f32 0.5, %v310
    %v312 = vsub.f32 1.5, %v311
    %v313 = vmul.f32 %v308, %v312
    %vm314 = vweird.f32 %v307
    %vm315 = vweird.f32 %v308
    %vm316 = vmor %vm314, %vm315
    %v317 = vsel %vm316, %v308, %v313
    %v318 = vmul.f32 %v61, %v317
    %v319 = vmul.f32 %v282, %v318
    %v320 = vsub.f32 %v62, %v319
    %v321 = vperm.slane %v318, 0
    %v322 = vmul.f32 %v259, %v321
    %v323 = vperm.slane %v320, 0
    %v324 = vadd.f32 %v322, %v323
    %v325 = vmax.f32 %v324, 0.0
    %v326 = vpack.c.bf16 %v325, %v325
    %v327 = vperm.slane %v63, 0
    %v344 = vunpack.c.l.b16 %v86
    %v345 = vunpack.c.l.b16 %v87
    %v346 = vunpack.c.l.b16 %v88
    %v347 = vunpack.c.l.b16 %v89
    %v348 = vunpack.c.l.b16 %v90
    %v349 = vunpack.c.l.b16 %v91
    %v350 = vunpack.c.l.b16 %v92
    %v351 = vunpack.c.l.b16 %v93
    %v352 = vunpack.c.l.b16 %v94
    %v353 = vunpack.c.l.b16 %v95
    %v354 = vunpack.c.l.b16 %v96
    %v355 = vunpack.c.l.b16 %v97
    %v356 = vunpack.c.l.b16 %v98
    %v357 = vunpack.c.l.b16 %v99
    %v358 = vunpack.c.l.b16 %v100
    %v359 = vunpack.c.l.b16 %v101
    %v360 = vpack.c.b16 %v345, %v344
    %v361 = vpack.c.b16 %v347, %v346
    %v362 = vpack.c.b16 %v349, %v348
    %v363 = vpack.c.b16 %v351, %v350
    %v364 = vpack.c.b16 %v353, %v352
    %v365 = vpack.c.b16 %v355, %v354
    %v366 = vpack.c.b16 %v357, %v356
    %v367 = vpack.c.b16 %v359, %v358
    %376 = vmatpush.bf16.msra.mxu0 %v367
    %377 = vmatpush.bf16.msra.mxu0 %v366
    %378 = vmatpush.bf16.msra.mxu0 %v365
    %379 = vmatpush.bf16.msra.mxu0 %v364
    %380 = vmatpush.bf16.msra.mxu0 %v363
    %381 = vmatpush.bf16.msra.mxu0 %v362
    %382 = vmatpush.bf16.msra.mxu0 %v361
    %383 = vmatpush.bf16.msra.mxu0 %v360
    %384 = vmatmul.bf16.gmra.mxu0 %v326
    %v385 = vpop.f32.mrf.mxu0
    %v386 = vadd.f32 %v327, %v385
    %v387 = vpop.f32.mrf.mxu0
    %388 = vdwg.mxu0
    %v389 = vmax.f32 %v386, 0.0
    %v390 = vpack.c.bf16 %v389, %v389
    %391 = vst [vmem:[#allocation8] sm:$0xf] %v390
    // Predicated region
    $region26: #{tpu_custom_call.1} parent=1 // pred_check
      _
    $region27: #{tpu_custom_call.1} parent=1 // pred_check_branch
      %393 = sbr.rel (0) target = $region29
    $region28: #{tpu_custom_call.1} parent=1 // pred_region
      %395 = vsyncadd [#allocation4], 0
      %s397 = sshll.u32 [#allocation8], 4
      %s398 = int_to_ptr.vmem [resolvable:$true] %s397
      %s399 = sshll.u32 %s3, 4
      %s400 = int_to_ptr.hbm [resolvable:$true] %s399
      %402 = dma.vmem_to_hbm [thread:$0]  %s398, 64, %s400, [#allocation4]
    $region29: #{tpu_custom_call.1} parent=1 // pred_fallthru
      _
    // Predicated region
    $region30: #{tpu_custom_call.1} parent=1 // pred_check
      _
    $region31: #{tpu_custom_call.1} parent=1 // pred_check_branch
      %404 = sbr.rel (0) target = $region33
    $region32: #{tpu_custom_call.1} parent=1 // pred_region
      %406 = dma.done [#allocation4], 64
    $region33: #{tpu_custom_call.1} parent=1 // pred_fallthru
      _
    %407 = vsyncpa [#allocation3], 1
    %408 = vsyncpa [#allocation6], 1
    %409 = vsyncpa [#allocation4], 1

</llo_original>
